<compile_context>
chip_gen: v6e
topology: v6e:2x2x1
jax: 0.10.0
libtpu: 0.0.40
codegen_flags: <defaults>
</compile_context>

<pallas_src>
import jax
import jax.numpy as jnp
from jax import lax
from jax.experimental import pallas as pl
from jax.experimental.pallas import tpu as pltpu


def _glip_kernel(x_ref, wc_ref, wl_ref, o_ref, y_ref):
    """One block of `tm` frames.

    x_ref : (tm, C, HW)  f32   input frames (cast to bf16 in-kernel)
    wc_ref: (OC, C)      bf16  conv1x1 weight (VMEM-resident across the grid)
    wl_ref: (HW, D)      bf16  linear weight, transposed (VMEM-resident)
    o_ref : (tm*OC, D)   f32   output block
    y_ref : (tm*OC, HW)  bf16  VMEM scratch holding the conv intermediate
    """
    tm = x_ref.shape[0]
    OC = wc_ref.shape[0]
    wc = wc_ref[...]                                                # (OC, C)

    def conv_one_frame(m, carry):
        xm = x_ref[m].astype(jnp.bfloat16)                          # (C, HW)
        ym = jnp.dot(wc, xm, preferred_element_type=jnp.float32)    # (OC, HW)
        start = pl.multiple_of(m * OC, OC)
        y_ref[pl.ds(start, OC), :] = ym.astype(jnp.bfloat16)
        return carry

    lax.fori_loop(0, tm, conv_one_frame, None, unroll=tm <= 8)

    # One merged matmul over every frame in the block: (tm*OC, HW) @ (HW, D).
    o_ref[...] = jnp.dot(y_ref[...], wl_ref[...],
                         preferred_element_type=jnp.float32).astype(o_ref.dtype)


def _choose_tm(BT, C, HW, OC, D, vmem_budget_bytes=12 * 1024 * 1024):
    """Pick frames-per-block: divisor of BT, legal block shape, fits VMEM,
    and (when possible) >=2 grid blocks so both v7x TensorCores get work."""
    def bytes_needed(tm):
        x_blk = 2 * tm * C * HW * 4        # double-buffered f32 input block
        o_blk = 2 * tm * OC * D * 4        # double-buffered f32 output block
        y_blk = tm * OC * HW * 2           # bf16 scratch
        w_blk = 2 * (OC * C + HW * D) * 2  # resident bf16 weights (x2 buffers)
        return x_blk + o_blk + y_blk + w_blk

    divisors = [d for d in range(1, BT + 1) if BT % d == 0]
    # Output block's second-to-last dim (tm*OC) must be a multiple of 8 unless
    # it spans the whole output (tm == BT).
    legal = [d for d in divisors if (d * OC) % 8 == 0 or d == BT]
    fitting = [d for d in legal if bytes_needed(d) <= vmem_budget_bytes] or [min(legal)]
    multi = [d for d in fitting if BT // d >= 2]
    pool = multi if multi else fitting
    return max(pool)


def glip_encoder_forward(x, w_conv, w_lin):
    """
    x:      (B, T, C, H, W) float32
    w_conv: (OC, C)   -- nn.Conv2d(C, OC, 1, bias=False).weight squeezed
    w_lin:  (D, HW)   -- nn.Linear(HW, D, bias=False).weight
    returns (B, T, OC * D)
    """
    B, T, C, H, W = x.shape
    HW = H * W
    OC, C2 = w_conv.shape
    D, HW2 = w_lin.shape
    assert C2 == C and HW2 == HW
    BT = B * T

    # Free (metadata-only) reshape: frames on the leading axis, HW on lanes.
    x3 = x.reshape(BT, C, HW)
    # Weights are tiny: cast/transpose at the wrapper, keep them VMEM-resident.
    wc = w_conv.astype(jnp.bfloat16)        # (OC, C)
    wl_t = w_lin.T.astype(jnp.bfloat16)     # (HW, D)

    tm = _choose_tm(BT, C, HW, OC, D)
    grid = (BT // tm,)

    out2d = pl.pallas_call(
        _glip_kernel,
        out_shape=jax.ShapeDtypeStruct((BT * OC, D), x.dtype),
        grid_spec=pltpu.PrefetchScalarGridSpec(
            num_scalar_prefetch=0,
            grid=grid,
            in_specs=[
                pl.BlockSpec((tm, C, HW), lambda i: (i, 0, 0)),   # x frame block
                pl.BlockSpec((OC, C), lambda i: (0, 0)),          # conv weight
                pl.BlockSpec((HW, D), lambda i: (0, 0)),          # linear weight^T
            ],
            out_specs=pl.BlockSpec((tm * OC, D), lambda i: (i, 0)),
            scratch_shapes=[pltpu.VMEM((tm * OC, HW), jnp.bfloat16)],
        ),
        compiler_params=pltpu.CompilerParams(
            dimension_semantics=("parallel",)),
    )(x3, wc, wl_t)

    # Free reshape: (BT*OC, D) is bit-identical to (B, T, OC*D).
    return out2d.reshape(B, T, OC * D)


def _reference(x, w_conv, w_lin):
    # Pure-JAX f32 reference with the original two-step (conv1x1 then linear) form.
    B, T, C, H, W = x.shape
    OC = w_conv.shape[0]
    D = w_lin.shape[0]
    xf = x.reshape(B * T, C, H * W)
    conv_out = jnp.einsum("oc,bcs->bos", w_conv, xf)          # (BT, OC, HW)
    lin_out = jnp.einsum("bos,ds->bod", conv_out, w_lin)      # (BT, OC, D)
    return lin_out.reshape(B, T, OC * D)


if __name__ == "__main__":
    # Small shapes consistent with the module's forward.
    B, T = 2, 3
    C = 4            # input_dims_conv
    OC = 8           # output_dims_conv
    H, W = 2, 4      # input_dims = H*W = 8
    D = 16           # output_dims -> final feature = OC * D = 128

    key = jax.random.PRNGKey(0)
    kx, kc, kl = jax.random.split(key, 3)

    x = jax.random.normal(kx, (B, T, C, H, W), dtype=jnp.float32)
    w_conv = jax.random.normal(kc, (OC, C), dtype=jnp.float32) * 0.1
    w_lin = jax.random.normal(kl, (D, H * W), dtype=jnp.float32) * 0.1

    out = jax.block_until_ready(glip_encoder_forward(x, w_conv, w_lin))
    ref = _reference(x, w_conv, w_lin)

    assert out.shape == (B, T, OC * D), out.shape
    # bf16 operands with f32 accumulation -> loosen tolerance slightly vs f32 ref.
    assert jnp.allclose(out, ref, rtol=2e-2, atol=1e-2), "mismatch vs reference"

    print("KERNEL_OK")
</pallas_src>

<mosaic_0001>
module attributes {stable_mosaic.version = 11 : i64} {
  func.func @_glip_kernel(%arg0: i32, %arg1: memref<3x4x8xf32, #tpu.memory_space<vmem>>, %arg2: memref<8x4xbf16, #tpu.memory_space<vmem>>, %arg3: memref<8x16xbf16, #tpu.memory_space<vmem>>, %arg4: memref<24x16xf32, #tpu.memory_space<vmem>>, %arg5: memref<24x8xbf16, #tpu.memory_space<vmem>>) attributes {dimension_semantics = [#tpu.dimension_semantics<parallel>], iteration_bounds = array<i64: 2>, scalar_prefetch = 0 : i64, scratch_operands = 1 : i64, tpu.core_type = #tpu.core_type<tc>, window_params = [{transform_indices = @transform_0, window_bounds = array<i64: 3, 4, 8>}, {pipeline_mode = #tpu.pipeline_mode<synchronous>, transform_indices = @transform_1, window_bounds = array<i64: 8, 4>}, {pipeline_mode = #tpu.pipeline_mode<synchronous>, transform_indices = @transform_2, window_bounds = array<i64: 8, 16>}, {transform_indices = @transform_3, window_bounds = array<i64: 24, 16>}]} {
    %c0 = arith.constant 0 : index
    %c0_0 = arith.constant 0 : index
    %0 = vector.load %arg2[%c0, %c0_0] : memref<8x4xbf16, #tpu.memory_space<vmem>>, vector<8x4xbf16>
    %c0_i32 = arith.constant 0 : i32
    %1 = arith.index_cast %c0_i32 : i32 to index
    %c0_1 = arith.constant 0 : index
    %c0_2 = arith.constant 0 : index
    %2 = vector.load %arg1[%1, %c0_1, %c0_2] : memref<3x4x8xf32, #tpu.memory_space<vmem>>, vector<1x4x8xf32>
    %3 = vector.shape_cast %2 : vector<1x4x8xf32> to vector<4x8xf32>
    %4 = arith.truncf %3 : vector<4x8xf32> to vector<4x8xbf16>
    %cst = arith.constant dense<0.000000e+00> : vector<8x8xf32>
    %5 = tpu.matmul %0, %4, %cst {dimension_numbers = #tpu.dot_dimension_numbers<[1], [0], [0], [1], [0, 0, 1, 1], [], []>} : vector<8x4xbf16>, vector<4x8xbf16>, vector<8x8xf32> -> vector<8x8xf32>
    %c8_i32 = arith.constant 8 : i32
    %6 = arith.muli %c0_i32, %c8_i32 : i32
    %7 = tpu.assume_multiple %6, 8 : i32
    %8 = arith.truncf %5 : vector<8x8xf32> to vector<8x8xbf16>
    %9 = arith.index_cast %7 : i32 to index
    %c0_3 = arith.constant 0 : index
    %10 = vector.load %arg5[%9, %c0_3] : memref<24x8xbf16, #tpu.memory_space<vmem>>, vector<8x8xbf16>
    tpu.vector_store %arg5[%9, %c0_3], %8 {strides = array<i32>} : memref<24x8xbf16, #tpu.memory_space<vmem>>, vector<8x8xbf16>,
    %c1_i32 = arith.constant 1 : i32
    %11 = arith.index_cast %c1_i32 : i32 to index
    %c0_4 = arith.constant 0 : index
    %c0_5 = arith.constant 0 : index
    %12 = vector.load %arg1[%11, %c0_4, %c0_5] : memref<3x4x8xf32, #tpu.memory_space<vmem>>, vector<1x4x8xf32>
    %13 = vector.shape_cast %12 : vector<1x4x8xf32> to vector<4x8xf32>
    %14 = arith.truncf %13 : vector<4x8xf32> to vector<4x8xbf16>
    %cst_6 = arith.constant dense<0.000000e+00> : vector<8x8xf32>
    %15 = tpu.matmul %0, %14, %cst_6 {dimension_numbers = #tpu.dot_dimension_numbers<[1], [0], [0], [1], [0, 0, 1, 1], [], []>} : vector<8x4xbf16>, vector<4x8xbf16>, vector<8x8xf32> -> vector<8x8xf32>
    %c8_i32_7 = arith.constant 8 : i32
    %16 = arith.muli %c1_i32, %c8_i32_7 : i32
    %17 = tpu.assume_multiple %16, 8 : i32
    %18 = arith.truncf %15 : vector<8x8xf32> to vector<8x8xbf16>
    %19 = arith.index_cast %17 : i32 to index
    %c0_8 = arith.constant 0 : index
    %20 = vector.load %arg5[%19, %c0_8] : memref<24x8xbf16, #tpu.memory_space<vmem>>, vector<8x8xbf16>
    tpu.vector_store %arg5[%19, %c0_8], %18 {strides = array<i32>} : memref<24x8xbf16, #tpu.memory_space<vmem>>, vector<8x8xbf16>,
    %c2_i32 = arith.constant 2 : i32
    %21 = arith.index_cast %c2_i32 : i32 to index
    %c0_9 = arith.constant 0 : index
    %c0_10 = arith.constant 0 : index
    %22 = vector.load %arg1[%21, %c0_9, %c0_10] : memref<3x4x8xf32, #tpu.memory_space<vmem>>, vector<1x4x8xf32>
    %23 = vector.shape_cast %22 : vector<1x4x8xf32> to vector<4x8xf32>
    %24 = arith.truncf %23 : vector<4x8xf32> to vector<4x8xbf16>
    %cst_11 = arith.constant dense<0.000000e+00> : vector<8x8xf32>
    %25 = tpu.matmul %0, %24, %cst_11 {dimension_numbers = #tpu.dot_dimension_numbers<[1], [0], [0], [1], [0, 0, 1, 1], [], []>} : vector<8x4xbf16>, vector<4x8xbf16>, vector<8x8xf32> -> vector<8x8xf32>
    %c8_i32_12 = arith.constant 8 : i32
    %26 = arith.muli %c2_i32, %c8_i32_12 : i32
    %27 = tpu.assume_multiple %26, 8 : i32
    %28 = arith.truncf %25 : vector<8x8xf32> to vector<8x8xbf16>
    %29 = arith.index_cast %27 : i32 to index
    %c0_13 = arith.constant 0 : index
    %30 = vector.load %arg5[%29, %c0_13] : memref<24x8xbf16, #tpu.memory_space<vmem>>, vector<8x8xbf16>
    tpu.vector_store %arg5[%29, %c0_13], %28 {strides = array<i32>} : memref<24x8xbf16, #tpu.memory_space<vmem>>, vector<8x8xbf16>,
    %c3_i32 = arith.constant 3 : i32
    %c0_14 = arith.constant 0 : index
    %c0_15 = arith.constant 0 : index
    %31 = vector.load %arg5[%c0_14, %c0_15] : memref<24x8xbf16, #tpu.memory_space<vmem>>, vector<24x8xbf16>
    %c0_16 = arith.constant 0 : index
    %c0_17 = arith.constant 0 : index
    %32 = vector.load %arg3[%c0_16, %c0_17] : memref<8x16xbf16, #tpu.memory_space<vmem>>, vector<8x16xbf16>
    %cst_18 = arith.constant dense<0.000000e+00> : vector<24x16xf32>
    %33 = tpu.matmul %31, %32, %cst_18 {dimension_numbers = #tpu.dot_dimension_numbers<[1], [0], [0], [1], [0, 0, 1, 1], [], []>} : vector<24x8xbf16>, vector<8x16xbf16>, vector<24x16xf32> -> vector<24x16xf32>
    %c0_19 = arith.constant 0 : index
    %c0_20 = arith.constant 0 : index
    %34 = vector.load %arg4[%c0_19, %c0_20] : memref<24x16xf32, #tpu.memory_space<vmem>>, vector<24x16xf32>
    tpu.vector_store %arg4[%c0_19, %c0_20], %33 {strides = array<i32>} : memref<24x16xf32, #tpu.memory_space<vmem>>, vector<24x16xf32>,
    return
  }
  func.func @transform_0(%arg0: i32) -> (i32, i32, i32) {
    %c0_i32 = arith.constant 0 : i32
    %c0_i32_0 = arith.constant 0 : i32
    %c0_i32_1 = arith.constant 0 : i32
    return %arg0, %c0_i32, %c0_i32_0 : i32, i32, i32
  }
  func.func @transform_1(%arg0: i32) -> (i32, i32) {
    %c0_i32 = arith.constant 0 : i32
    %c0_i32_0 = arith.constant 0 : i32
    %c0_i32_1 = arith.constant 0 : i32
    return %c0_i32, %c0_i32_0 : i32, i32
  }
  func.func @transform_2(%arg0: i32) -> (i32, i32) {
    %c0_i32 = arith.constant 0 : i32
    %c0_i32_0 = arith.constant 0 : i32
    %c0_i32_1 = arith.constant 0 : i32
    return %c0_i32, %c0_i32_0 : i32, i32
  }
  func.func @transform_3(%arg0: i32) -> (i32, i32) {
    %c0_i32 = arith.constant 0 : i32
    %c0_i32_0 = arith.constant 0 : i32
    return %arg0, %c0_i32 : i32, i32
  }
}

</mosaic_0001>

<llo_original>
// kernel: tpu_custom_call.1
$region0: #{tpu_custom_call.1}
  #allocation0 [shape = 'u32[]', space=smem, size = 0x4, offset = 0x4, fixed_abs, tag = 'smem constant byte address 0x4 - core index']
  #allocation1 [shape = 'u32[144,128]{1,0:T(1,128)}', space=vmem, size = 0x12000, scoped, tag = 'internal scratch']
  #allocation2 [shape = 'bf16[24,8]{1,0:T(8,128)(2,1)}', space=vmem, size = 0x1800, scoped, tag = 'scratch operand']
  %s0 = inlined_call_operand.hbm [shape: f32[6,4,8], index: 0, kind: input, shape index: {}]
  %s1 = inlined_call_operand.vmem [shape: bf16[8,4], index: 1, kind: input, shape index: {}]
  %s2 = inlined_call_operand.vmem [shape: bf16[8,16], index: 2, kind: input, shape index: {}]
  %s3 = inlined_call_operand.vmem [shape: f32[48,16], index: 3, kind: output, shape index: {}]
  %s4 = sld [smem:[#allocation0]]
  $region49: #{tpu_custom_call.1} parent=0
    _
  %s6 = ssub.s32 1, %s4
  %s7 = scalar_select 0, %s6, %s4
  $region1: #{tpu_custom_call.1} parent=0
    #allocation3 [shape = 'u8[12288]{0}', space=vmem, size = 0x3000, scoped, tag = 'input window, operand 0']
    #allocation4 [shape = 's32[2]{0}', space=sflag, size = 0x8, scoped, tag = 'scoped memory for tpu_custom_call.1']
    %8 = vsyncpa [#allocation4], 0
    %s9 = scalar_lea.sflag [#allocation4], 1
    %10 = vsyncpa %s9, 0
    loop: start=0, step=1, limit=4
    $region2: #{tpu_custom_call.1} parent=1 // loop_pre_header
      _
    $region3: #{tpu_custom_call.1} parent=1 // loop_header
      %s12 = sphi 0, %s16
      %p13 = scmp.ge.s32.totalorder %s12, 4
      %s22 = sphi 0, %s24
      %s25 = sphi 0, %s22
      %s26 = sphi 0, %s25
      %s42 = sphi 0, %s26
      %s46 = sphi 0, %s46
      %s48 = sphi 0, %s46
      %s49 = sphi 0, %s48
      %s63 = sphi 0, %s49
      %s67 = sphi 0, %s67
      %s69 = sphi 0, %s67
      %s70 = sphi 0, %s69
      %s84 = sphi 0, %s70
      %s90 = sphi 0, %s92
      %s93 = sphi 0, %s90
      %s94 = sphi 0, %s93
      %s110 = sphi 0, %s94
    $region4: #{tpu_custom_call.1} parent=1 // loop_header_branch
      %15 = sbr.rel (%p13) target = $region8
    $region5: #{tpu_custom_call.1} parent=1 // loop_body
      %s17 = ssub.s32 %s12, 1
      %s18 = ssub.s32 %s12, 2
      %s19 = sadd.s32 %s12, 1
      %s20 = ssub.s32 %s12, %s19
      %p21 = scmp.eq.s32.totalorder %s20, 0
      %s23 = sadd.s32 %s22, 1
      %s24 = scalar_select %p21, %s22, %s23
      %p27 = pneg %p21
      %p28 = scmp.eq.s32.totalorder %s12, 1
      %p29 = por %p27, %p28
      %p30 = scmp.ne.s32.totalorder %s22, %s25
      %p31 = scmp.eq.s32.totalorder %s12, 0
      %p32 = por %p30, %p31
      %p33 = scmp.ne.s32.totalorder %s22, %s25
      %p34 = scmp.eq.s32.totalorder %s17, 1
      %p35 = por %p33, %p34
      %p36 = scmp.ne.s32.totalorder %s25, %s26
      %p37 = scmp.eq.s32.totalorder %s17, 0
      %p38 = por %p36, %p37
      %p39 = scmp.ne.s32.totalorder %s25, %s26
      %p40 = scmp.eq.s32.totalorder %s18, 1
      %p41 = por %p39, %p40
      %p43 = scmp.ne.s32.totalorder %s26, %s42
      %p44 = scmp.eq.s32.totalorder %s18, 0
      %p45 = por %p43, %p44
      %s47 = sadd.s32 %s46, 1
      %p50 = scmp.eq.s32.totalorder %s12, 1
      %p51 = scmp.ne.s32.totalorder %s46, %s48
      %p52 = scmp.eq.s32.totalorder %s12, 0
      %p53 = por %p51, %p52
      %p54 = scmp.ne.s32.totalorder %s46, %s48
      %p55 = scmp.eq.s32.totalorder %s17, 1
      %p56 = por %p54, %p55
      %p57 = scmp.ne.s32.totalorder %s48, %s49
      %p58 = scmp.eq.s32.totalorder %s17, 0
      %p59 = por %p57, %p58
      %p60 = scmp.ne.s32.totalorder %s48, %s49
      %p61 = scmp.eq.s32.totalorder %s18, 1
      %p62 = por %p60, %p61
      %p64 = scmp.ne.s32.totalorder %s49, %s63
      %p65 = scmp.eq.s32.totalorder %s18, 0
      %p66 = por %p64, %p65
      %s68 = sadd.s32 %s67, 1
      %p71 = scmp.eq.s32.totalorder %s12, 1
      %p72 = scmp.ne.s32.totalorder %s67, %s69
      %p73 = scmp.eq.s32.totalorder %s12, 0
      %p74 = por %p72, %p73
      %p75 = scmp.ne.s32.totalorder %s67, %s69
      %p76 = scmp.eq.s32.totalorder %s17, 1
      %p77 = por %p75, %p76
      %p78 = scmp.ne.s32.totalorder %s69, %s70
      %p79 = scmp.eq.s32.totalorder %s17, 0
      %p80 = por %p78, %p79
      %p81 = scmp.ne.s32.totalorder %s69, %s70
      %p82 = scmp.eq.s32.totalorder %s18, 1
      %p83 = por %p81, %p82
      %p85 = scmp.ne.s32.totalorder %s70, %s84
      %p86 = scmp.eq.s32.totalorder %s18, 0
      %p87 = por %p85, %p86
      %s88 = ssub.s32 %s12, %s19
      %p89 = scmp.eq.s32.totalorder %s88, 0
      %s91 = sadd.s32 %s90, 1
      %s92 = scalar_select %p89, %s90, %s91
      %p95 = pneg %p89
      %p96 = scmp.eq.s32.totalorder %s12, 1
      %p97 = por %p95, %p96
      %p98 = scmp.ne.s32.totalorder %s90, %s93
      %p99 = scmp.eq.s32.totalorder %s12, 0
      %p100 = por %p98, %p99
      %p101 = scmp.ne.s32.totalorder %s90, %s93
      %p102 = scmp.eq.s32.totalorder %s17, 1
      %p103 = por %p101, %p102
      %p104 = scmp.ne.s32.totalorder %s93, %s94
      %p105 = scmp.eq.s32.totalorder %s17, 0
      %p106 = por %p104, %p105
      %p107 = scmp.ne.s32.totalorder %s93, %s94
      %p108 = scmp.eq.s32.totalorder %s18, 1
      %p109 = por %p107, %p108
      %p111 = scmp.ne.s32.totalorder %s94, %s110
      %p112 = scmp.eq.s32.totalorder %s18, 0
      %p113 = por %p111, %p112
      %p114 = scmp.le.s32.totalorder 1, %s12
      %p115 = scmp.lt.s32.totalorder %s12, 3
      %p116 = pnand %p114, %p115
      %p117 = pneg %p116
      // Predicated region
      $region9: #{tpu_custom_call.1} parent=5 // pred_check
        _
      $region10: #{tpu_custom_call.1} parent=5 // pred_check_branch
        %119 = sbr.rel (%p116) target = $region12
      $region11: #{tpu_custom_call.1} parent=5 // pred_region
        %s120 = ssub.s32 %s12, 1
        // Predicated region
        $region13: #{tpu_custom_call.1} parent=11 // pred_check
          %p121 = pneg %p59
        $region14: #{tpu_custom_call.1} parent=11 // pred_check_branch
          %123 = sbr.rel (%p121) target = $region16
        $region15: #{tpu_custom_call.1} parent=11 // pred_region
          _
        $region16: #{tpu_custom_call.1} parent=11 // pred_fallthru
          _
        // Predicated region
        $region17: #{tpu_custom_call.1} parent=11 // pred_check
          %p124 = pneg %p80
        $region18: #{tpu_custom_call.1} parent=11 // pred_check_branch
          %126 = sbr.rel (%p124) target = $region20
        $region19: #{tpu_custom_call.1} parent=11 // pred_region
          _
        $region20: #{tpu_custom_call.1} parent=11 // pred_fallthru
          _
      $region12: #{tpu_custom_call.1} parent=5 // pred_fallthru
        _
      %p127 = scmp.lt.s32.totalorder %s12, 2
      // Predicated region
      $region21: #{tpu_custom_call.1} parent=5 // pred_check
        %p128 = pneg %p127
      $region22: #{tpu_custom_call.1} parent=5 // pred_check_branch
        %130 = sbr.rel (%p128) target = $region24
      $region23: #{tpu_custom_call.1} parent=5 // pred_region
        // Predicated region
        $region25: #{tpu_custom_call.1} parent=23 // pred_check
          %p131 = pneg %p32
        $region26: #{tpu_custom_call.1} parent=23 // pred_check_branch
          %133 = sbr.rel (%p131) target = $region28
        $region27: #{tpu_custom_call.1} parent=23 // pred_region
          %s134 = sand.u32 %s22, 1
          %s135 = scalar_lea.sflag [#allocation4], %s134
          %s136 = sand.u32 %s22, 1
          %s137 = smul.addr %s136, 12
          %s138 = scalar_lea.vmem [#allocation3], %s137
          %s139 = smul.u32 3, %s12
          %s141 = ssub.s32 192, 192
          %142 = vsyncadd %s135, %s141
          %s143 = smul.addr %s139, 64
          %s144 = scalar_lea.hbm %s0, %s143
          %s145 = sshll.u32 %s138, 4
          %s146 = int_to_ptr.vmem [resolvable:$true] %s145
          %151 = dma.hbm_to_vmem [thread:$0]  %s144, 192, %s146, %s135, 64, 64, 4
        $region28: #{tpu_custom_call.1} parent=23 // pred_fallthru
          _
      $region24: #{tpu_custom_call.1} parent=5 // pred_fallthru
        _
      %p152 = scmp.le.s32.totalorder 1, %s12
      %p153 = scmp.lt.s32.totalorder %s12, 3
      %p154 = pnand %p152, %p153
      %p155 = pneg %p154
      // Predicated region
      $region29: #{tpu_custom_call.1} parent=5 // pred_check
        _
      $region30: #{tpu_custom_call.1} parent=5 // pred_check_branch
        %157 = sbr.rel (%p154) target = $region32
      $region31: #{tpu_custom_call.1} parent=5 // pred_region
        %s158 = ssub.s32 %s12, 1
        %s159 = sand.u32 %s25, 1
        %s160 = scalar_lea.sflag [#allocation4], %s159
        %s161 = sand.u32 %s25, 1
        %s162 = smul.addr %s161, 12
        %s163 = scalar_lea.vmem [#allocation3], %s162
        // Predicated region
        $region33: #{tpu_custom_call.1} parent=31 // pred_check
          %p164 = pneg %p38
        $region34: #{tpu_custom_call.1} parent=31 // pred_check_branch
          %166 = sbr.rel (%p164) target = $region36
        $region35: #{tpu_custom_call.1} parent=31 // pred_region
          %167 = dma.done %s160, 192
        $region36: #{tpu_custom_call.1} parent=31 // pred_fallthru
          _
        %s168 = sand.u32 %s25, 1
        %s169 = scalar_lea.sflag [#allocation4], %s168
        %s170 = sand.u32 %s25, 1
        %s171 = smul.addr %s170, 12
        %s172 = scalar_lea.vmem [#allocation3], %s171
        %p173 = pneg %p38
        %p174 = pneg %p35
        %p175 = pneg %p59
        %p176 = pneg %p56
        %p177 = pneg %p80
        %p178 = pneg %p77
        %p179 = pneg %p106
        %p180 = pneg %p103
        %s181 = smul.u32 3, %s17
        %p182 = scmp.lt.s32.totalorder %s181, 5
        %s183 = scalar_select %p182, %s181, 5
        %s184 = smul.addr %s183, 8
        %s185 = scalar_lea.vmem %s3, %s184
        %s186 = smul.u32 3, %s17
        %s187 = smul.u32 3, %s17
        %p188 = scmp.lt.s32.totalorder %s187, 5
        %s189 = scalar_select %p188, %s187, 5
        %s190 = smul.addr %s189, 8
        %s191 = scalar_lea.vmem %s3, %s190
        %s192 = smul.u32 3, %s17
        %v194 = vld [vmem:[%s1] sm:$0xf]
        %v195 = vld [vmem:[%s163] sm:$0xf]
        %v196 = vpack.c.bf16 %v195, %v195
        %vm197 = vcmask 31744
        %v199 = vsel %vm197, %v194, 0
        %vm201 = vcmask 1041408
        %v203 = vsel %vm201, %v196, 0
        %205 = vmatprep.subr.bf16.mxu0 0
        %206 = vmatpush1.bf16.msra.mxu0 0
        %207 = vmatprep.subr.bf16.mxu0 0
        %208 = vmatpush1.bf16.msra.mxu0 0
        %209 = vmatprep.subr.bf16.mxu0 0
        %210 = vmatpush1.bf16.msra.mxu0 0
        %211 = vmatprep.subr.bf16.mxu0 0
        %212 = vmatpush1.bf16.msra.mxu0 0
        %213 = vmatprep.subr.bf16.mxu0 0
        %214 = vmatpush1.bf16.msra.mxu0 0
        %215 = vmatprep.subr.bf16.mxu0 0
        %216 = vmatpush1.bf16.msra.mxu0 0
        %217 = vmatprep.subr.bf16.mxu0 0
        %218 = vmatpush1.bf16.msra.mxu0 0
        %219 = vmatprep.subr.bf16.mxu0 0
        %220 = vmatpush1.bf16.msra.mxu0 %v203
        %221 = vmatprep.subr.bf16.mxu0 0
        %222 = vmatpush2.bf16.msra.mxu0 0
        %223 = vmatprep.subr.bf16.mxu0 0
        %224 = vmatpush2.bf16.msra.mxu0 0
        %225 = vmatprep.subr.bf16.mxu0 0
        %226 = vmatpush2.bf16.msra.mxu0 0
        %227 = vmatprep.subr.bf16.mxu0 0
        %228 = vmatpush2.bf16.msra.mxu0 0
        %229 = vmatprep.subr.bf16.mxu0 0
        %230 = vmatpush2.bf16.msra.mxu0 0
        %231 = vmatprep.subr.bf16.mxu0 0
        %232 = vmatpush2.bf16.msra.mxu0 0
        %233 = vmatprep.subr.bf16.mxu0 0
        %234 = vmatpush2.bf16.msra.mxu0 0
        %235 = vmatprep.subr.bf16.mxu0 0
        %236 = vmatpush2.bf16.msra.mxu0 0
        %237 = vmatprep.mubr.bf16.mxu0 0
        %238 = vmatmul.mubr.bf16.gmra.mxu0 %v199
        %v239 = vpop.f32.mrf.mxu0
        %v240 = vadd.f32 0.0, %v239
        %v241 = vpop.f32.mrf.mxu0
        %v242 = vpop.f32.mrf.mxu0
        %v243 = vpop.f32.mrf.mxu0
        %244 = vdwg.mxu0
        %v245 = vpack.c.bf16 %v240, %v240
        %vm246 = vcmask 60416
        %247 = vst.msk [vmem:[#allocation2] sm:$0xf] %vm246, %v245
        %s248 = scalar_lea.vmem %s163, 4 [#allocation3]
        %v249 = vld [vmem:[%s248] sm:$0xf]
        %v250 = vpack.c.bf16 %v249, %v249
        %v252 = vsel %vm201, %v250, 0
        %254 = vmatprep.subr.bf16.mxu0 0
        %255 = vmatpush1.bf16.msra.mxu0 0
        %256 = vmatprep.subr.bf16.mxu0 0
        %257 = vmatpush1.bf16.msra.mxu0 0
        %258 = vmatprep.subr.bf16.mxu0 0
        %259 = vmatpush1.bf16.msra.mxu0 0
        %260 = vmatprep.subr.bf16.mxu0 0
        %261 = vmatpush1.bf16.msra.mxu0 0
        %262 = vmatprep.subr.bf16.mxu0 0
        %263 = vmatpush1.bf16.msra.mxu0 0
        %264 = vmatprep.subr.bf16.mxu0 0
        %265 = vmatpush1.bf16.msra.mxu0 0
        %266 = vmatprep.subr.bf16.mxu0 0
        %267 = vmatpush1.bf16.msra.mxu0 0
        %268 = vmatprep.subr.bf16.mxu0 0
        %269 = vmatpush1.bf16.msra.mxu0 %v252
        %270 = vmatprep.subr.bf16.mxu0 0
        %271 = vmatpush2.bf16.msra.mxu0 0
        %272 = vmatprep.subr.bf16.mxu0 0
        %273 = vmatpush2.bf16.msra.mxu0 0
        %274 = vmatprep.subr.bf16.mxu0 0
        %275 = vmatpush2.bf16.msra.mxu0 0
        %276 = vmatprep.subr.bf16.mxu0 0
        %277 = vmatpush2.bf16.msra.mxu0 0
        %278 = vmatprep.subr.bf16.mxu0 0
        %279 = vmatpush2.bf16.msra.mxu0 0
        %280 = vmatprep.subr.bf16.mxu0 0
        %281 = vmatpush2.bf16.msra.mxu0 0
        %282 = vmatprep.subr.bf16.mxu0 0
        %283 = vmatpush2.bf16.msra.mxu0 0
        %284 = vmatprep.subr.bf16.mxu0 0
        %285 = vmatpush2.bf16.msra.mxu0 0
        %286 = vmatprep.mubr.bf16.mxu0 0
        %287 = vmatmul.mubr.bf16.gmra.mxu0 %v199
        %v288 = vpop.f32.mrf.mxu0
        %v289 = vadd.f32 0.0, %v288
        %v290 = vpop.f32.mrf.mxu0
        %v291 = vpop.f32.mrf.mxu0
        %v292 = vpop.f32.mrf.mxu0
        %293 = vdwg.mxu0
        %v294 = vpack.c.bf16 %v289, %v289
        %s295 = scalar_lea.vmem [#allocation2], 4
        %296 = vst.msk [vmem:[%s295] sm:$0xf] %vm246, %v294
        %s297 = scalar_lea.vmem %s163, 8 [#allocation3]
        %v298 = vld [vmem:[%s297] sm:$0xf]
        %v299 = vpack.c.bf16 %v298, %v298
        %v301 = vsel %vm201, %v299, 0
        %303 = vmatprep.subr.bf16.mxu0 0
        %304 = vmatpush1.bf16.msra.mxu0 0
        %305 = vmatprep.subr.bf16.mxu0 0
        %306 = vmatpush1.bf16.msra.mxu0 0
        %307 = vmatprep.subr.bf16.mxu0 0
        %308 = vmatpush1.bf16.msra.mxu0 0
        %309 = vmatprep.subr.bf16.mxu0 0
        %310 = vmatpush1.bf16.msra.mxu0 0
        %311 = vmatprep.subr.bf16.mxu0 0
        %312 = vmatpush1.bf16.msra.mxu0 0
        %313 = vmatprep.subr.bf16.mxu0 0
        %314 = vmatpush1.bf16.msra.mxu0 0
        %315 = vmatprep.subr.bf16.mxu0 0
        %316 = vmatpush1.bf16.msra.mxu0 0
        %317 = vmatprep.subr.bf16.mxu0 0
        %318 = vmatpush1.bf16.msra.mxu0 %v301
        %319 = vmatprep.subr.bf16.mxu0 0
        %320 = vmatpush2.bf16.msra.mxu0 0
        %321 = vmatprep.subr.bf16.mxu0 0
        %322 = vmatpush2.bf16.msra.mxu0 0
        %323 = vmatprep.subr.bf16.mxu0 0
        %324 = vmatpush2.bf16.msra.mxu0 0
        %325 = vmatprep.subr.bf16.mxu0 0
        %326 = vmatpush2.bf16.msra.mxu0 0
        %327 = vmatprep.subr.bf16.mxu0 0
        %328 = vmatpush2.bf16.msra.mxu0 0
        %329 = vmatprep.subr.bf16.mxu0 0
        %330 = vmatpush2.bf16.msra.mxu0 0
        %331 = vmatprep.subr.bf16.mxu0 0
        %332 = vmatpush2.bf16.msra.mxu0 0
        %333 = vmatprep.subr.bf16.mxu0 0
        %334 = vmatpush2.bf16.msra.mxu0 0
        %335 = vmatprep.mubr.bf16.mxu0 0
        %336 = vmatmul.mubr.bf16.gmra.mxu0 %v199
        %v337 = vpop.f32.mrf.mxu0
        %v338 = vadd.f32 0.0, %v337
        %v339 = vpop.f32.mrf.mxu0
        %v340 = vpop.f32.mrf.mxu0
        %v341 = vpop.f32.mrf.mxu0
        %342 = vdwg.mxu0
        %v343 = vpack.c.bf16 %v338, %v338
        %s344 = scalar_lea.vmem [#allocation2], 8
        %345 = vst.msk [vmem:[%s344] sm:$0xf] %vm246, %v343
        %v346 = vld [vmem:[#allocation2] sm:$0xf]
        %v347 = vld [vmem:[#allocation2 + $0x4] sm:$0xf]
        %v348 = vld [vmem:[#allocation2 + $0x8] sm:$0xf]
        %v349 = vld [vmem:[%s2] sm:$0xf]
        %v353 = vunpack.c.l.b16 %v346
        %v354 = vunpack.c.l.b16 %v347
        %v355 = vunpack.c.l.b16 %v348
        %v356 = vpack.c.b16 %v354, %v353
        %v357 = vpack.c.b16 %v355, %v355
        %vm358 = vcmask 64512
        %v360 = vsel %vm358, %v356, 0
        %v363 = vsel %vm358, %v357, 0
        %vm365 = vcmask 1043456
        %v367 = vsel %vm365, %v349, 0
        %369 = vmatprep.subr.bf16.mxu0 0
        %370 = vmatpush1.bf16.msra.mxu0 0
        %371 = vmatprep.subr.bf16.mxu0 0
        %372 = vmatpush1.bf16.msra.mxu0 0
        %373 = vmatprep.subr.bf16.mxu0 0
        %374 = vmatpush1.bf16.msra.mxu0 0
        %375 = vmatprep.subr.bf16.mxu0 0
        %376 = vmatpush1.bf16.msra.mxu0 0
        %377 = vmatprep.subr.bf16.mxu0 0
        %378 = vmatpush1.bf16.msra.mxu0 0
        %379 = vmatprep.subr.bf16.mxu0 0
        %380 = vmatpush1.bf16.msra.mxu0 0
        %381 = vmatprep.subr.bf16.mxu0 0
        %382 = vmatpush1.bf16.msra.mxu0 0
        %383 = vmatprep.subr.bf16.mxu0 0
        %384 = vmatpush1.bf16.msra.mxu0 %v367
        %385 = vmatprep.subr.bf16.mxu0 0
        %386 = vmatpush2.bf16.msra.mxu0 0
        %387 = vmatprep.subr.bf16.mxu0 0
        %388 = vmatpush2.bf16.msra.mxu0 0
        %389 = vmatprep.subr.bf16.mxu0 0
        %390 = vmatpush2.bf16.msra.mxu0 0
        %391 = vmatprep.subr.bf16.mxu0 0
        %392 = vmatpush2.bf16.msra.mxu0 0
        %393 = vmatprep.subr.bf16.mxu0 0
        %394 = vmatpush2.bf16.msra.mxu0 0
        %395 = vmatprep.subr.bf16.mxu0 0
        %396 = vmatpush2.bf16.msra.mxu0 0
        %397 = vmatprep.subr.bf16.mxu0 0
        %398 = vmatpush2.bf16.msra.mxu0 0
        %399 = vmatprep.subr.bf16.mxu0 0
        %400 = vmatpush2.bf16.msra.mxu0 0
        %401 = vmatprep.mubr.bf16.mxu0 0
        %402 = vmatmul.mubr.bf16.gmra.mxu0 %v360
        %v403 = vpop.f32.mrf.mxu0
        %v404 = vadd.f32 0.0, %v403
        %v405 = vpop.f32.mrf.mxu0
        %v406 = vpop.f32.mrf.mxu0
        %v407 = vadd.f32 0.0, %v406
        %v408 = vpop.f32.mrf.mxu0
        %409 = vmatprep.mubr.bf16.mxu0 0
        %410 = vmatmul.mubr.bf16.gmra.mxu0 %v363
        %v411 = vpop.f32.mrf.mxu0
        %v412 = vadd.f32 0.0, %v411
        %v413 = vpop.f32.mrf.mxu0
        %v414 = vpop.f32.mrf.mxu0
        %v415 = vpop.f32.mrf.mxu0
        %416 = vdwg.mxu0
        %vm417 = vcmask 130048
        %418 = vst.msk [vmem:[%s191] sm:$0xff] %vm417, %v404
        %419 = vst.msk [vmem:[%s191 + $0x8] sm:$0xff] %vm417, %v407
        %420 = vst.msk [vmem:[%s191 + $0x10] sm:$0xff] %vm417, %v412
        %s421 = smul.u32 3, %s17
        %p422 = scmp.lt.s32.totalorder %s421, 5
        %s423 = scalar_select %p422, %s421, 5
        %s424 = smul.addr %s423, 8
        %s425 = scalar_lea.vmem %s3, %s424
        // Predicated region
        $region37: #{tpu_custom_call.1} parent=31 // pred_check
          %p426 = pneg %p103
        $region38: #{tpu_custom_call.1} parent=31 // pred_check_branch
          %428 = sbr.rel (%p426) target = $region40
        $region39: #{tpu_custom_call.1} parent=31 // pred_region
          %s429 = smul.u32 3, %s17
        $region40: #{tpu_custom_call.1} parent=31 // pred_fallthru
          _
      $region32: #{tpu_custom_call.1} parent=5 // pred_fallthru
        _
      %p430 = scmp.le.s32.totalorder 2, %s12
      // Predicated region
      $region41: #{tpu_custom_call.1} parent=5 // pred_check
        %p431 = pneg %p430
      $region42: #{tpu_custom_call.1} parent=5 // pred_check_branch
        %433 = sbr.rel (%p431) target = $region44
      $region43: #{tpu_custom_call.1} parent=5 // pred_region
        %s434 = ssub.s32 %s12, 2
        // Predicated region
        $region45: #{tpu_custom_call.1} parent=43 // pred_check
          %p435 = pneg %p109
        $region46: #{tpu_custom_call.1} parent=43 // pred_check_branch
          %437 = sbr.rel (%p435) target = $region48
        $region47: #{tpu_custom_call.1} parent=43 // pred_region
          %s438 = smul.u32 3, %s18
          %p439 = scmp.lt.s32.totalorder %s438, 5
          %s440 = scalar_select %p439, %s438, 5
          %s441 = smul.addr %s440, 8
          %s442 = scalar_lea.vmem %s3, %s441
        $region48: #{tpu_custom_call.1} parent=43 // pred_fallthru
          _
      $region44: #{tpu_custom_call.1} parent=5 // pred_fallthru
        _
    $region6: #{tpu_custom_call.1} parent=1 // loop_footer
      %s16 = sadd.s32 1, %s12
    $region7: #{tpu_custom_call.1} parent=1 // loop_footer_branch
      %11 = sbr.rel target = $region3
    $region8: #{tpu_custom_call.1} parent=1 // loop_exit
      _
    %443 = vsyncpa [#allocation4], 1
    %s444 = scalar_lea.sflag [#allocation4], 1
    %445 = vsyncpa %s444, 1

</llo_original>
